<compile_context>
chip_gen: v5e
topology: v5e:2x2
jax: 0.10.0
libtpu: 0.0.40
codegen_flags: <defaults>
</compile_context>

<pallas_src>
import functools
import math

import jax
import jax.numpy as jnp
from jax import lax
from jax.experimental import pallas as pl
from jax.experimental.pallas import tpu as pltpu


# Tables up to this many bytes use the VMEM-resident gather path. Conservative
# so table (+ double-buffered output block) stays inside the 32 MiB scoped
# VMEM limit requested below on every generation (v7x has 64 MiB per core).
_VMEM_TABLE_BYTES_MAX = 8 * 1024 * 1024
_VMEM_LIMIT_BYTES = 32 * 1024 * 1024
_MAX_TILE_TOKENS = 1024


def _round_up(x, m):
    return ((x + m - 1) // m) * m


def _vmem_gather_kernel(ids_ref, table_ref, out_ref, *, tile_n, scale):
    """Gather from a VMEM-resident table: no DMA descriptors at all.

    ids_ref   : (N_pad,) int32 token ids in SMEM (scalar prefetch)
    table_ref : (V, D) embedding table, resident VMEM block
    out_ref   : (tile_n, D) output block (VMEM, auto-pipelined)
    """
    base = pl.program_id(0) * tile_n

    def gather8(c, carry):
        # 8 single-row dynamic-slice loads -> one aligned (8, D) store with
        # the sqrt(d_model) scale fused in.
        rows = [
            table_ref[pl.ds(ids_ref[base + c * 8 + j], 1), :]
            for j in range(8)
        ]
        r0 = pl.multiple_of(c * 8, 8)
        out_ref[pl.ds(r0, 8), :] = jnp.concatenate(rows, axis=0) * scale
        return carry

    lax.fori_loop(0, tile_n // 8, gather8, 0)


def _hbm_gather_kernel(ids_ref, w_hbm, out_ref, sem, *, tile_n, scale):
    """Gather from an HBM-resident table with per-row DMAs into out_ref.

    ids_ref : (N_pad,) int32 token ids in SMEM (scalar prefetch)
    w_hbm   : (V, D) embedding table left in HBM (memory_space=pl.ANY)
    out_ref : (tile_n, D) output block (VMEM); row DMAs land here directly
    sem     : scalar DMA semaphore shared by all row copies of this tile
    """
    base = pl.program_id(0) * tile_n

    # Issue all row-gather DMAs for this tile; unrolled so the LLO scheduler
    # can co-issue the SMEM id load, address math and descriptor push.
    def issue(r, carry):
        tok = ids_ref[base + r]
        pltpu.make_async_copy(
            w_hbm.at[pl.ds(tok, 1)],        # one (1, D) row of the table
            out_ref.at[pl.ds(r, 1)],        # straight into the output block
            sem,
        ).start()
        return carry

    lax.fori_loop(0, tile_n, issue, 0, unroll=8)

    # ONE aggregate wait: every row copy signals `sem` with D*itemsize bytes,
    # so a single wait sized (tile_n, D) consumes them all. (The wrapper
    # guarantees tile_n <= V so the shape-only source slice is in bounds.)
    pltpu.make_async_copy(w_hbm.at[pl.ds(0, tile_n)], out_ref, sem).wait()
    # TODO(synk): chunk the issue loop (32-64 rows, 2-deep semaphores) to
    # overlap the scale/store of chunk c with descriptor issue of chunk c+1.

    # Fused sqrt(d_model) scaling in place on the VPU.
    out_ref[...] = out_ref[...] * scale


def token_embedding(x, embed_table, *, max_tile=_MAX_TILE_TOKENS,
                    force_hbm_gather=False):
    """x: (B, S) integer token ids; embed_table: (V, D) float table.
    Returns embed_table[x] * sqrt(D), shape (B, S, D)."""
    B, S = x.shape
    V, D = embed_table.shape
    N = B * S
    scale = math.sqrt(D)                       # scale uses the true d_model
    itemsize = jnp.dtype(embed_table.dtype).itemsize
    table_bytes = V * D * itemsize

    use_vmem_table = (table_bytes <= _VMEM_TABLE_BYTES_MAX) or (V < 8)
    if force_hbm_gather and V >= 8:
        use_vmem_table = False

    # Token-tile size from a VMEM budget (double-buffered output block), not
    # a fixed constant; always a multiple of 8 (sublane alignment).
    out_budget = 8 * 1024 * 1024 if use_vmem_table else 16 * 1024 * 1024
    row_bytes = D * itemsize
    tile_cap = max(8, (out_budget // (2 * row_bytes)) // 8 * 8)
    eff_tile = min(max_tile, tile_cap, _round_up(N, 8))
    if N >= 16:
        # Keep >= 2 grid steps so the "parallel" token axis can split across
        # both TensorCores on v7x (costs one extra ~0.35us step elsewhere).
        eff_tile = min(eff_tile, _round_up(-(-N // 2), 8))
    eff_tile = max(8, eff_tile)
    if not use_vmem_table:
        # Aggregate-wait descriptor slices rows [0, eff_tile) of the table.
        eff_tile = max(8, min(eff_tile, (V // 8) * 8))

    num_tiles = -(-N // eff_tile)
    n_pad = num_tiles * eff_tile

    # Ids -> SMEM via scalar prefetch. Out-of-range ids are clamped so the
    # gather stays in bounds (nn.Embedding would raise instead).
    # TODO(synk): surface an explicit error for out-of-range token ids.
    ids = jnp.clip(x.reshape(N).astype(jnp.int32), 0, V - 1)
    if n_pad != N:
        ids = jnp.pad(ids, (0, n_pad - N))     # pad tokens gather row 0

    out_shape = jax.ShapeDtypeStruct((n_pad, D), embed_table.dtype)
    out_block = pl.BlockSpec((eff_tile, D), lambda i, ids_sref: (i, 0))
    cparams = pltpu.CompilerParams(
        dimension_semantics=("parallel",),     # megacore-shard token tiles
        vmem_limit_bytes=_VMEM_LIMIT_BYTES)

    if use_vmem_table:
        kernel = functools.partial(_vmem_gather_kernel,
                                   tile_n=eff_tile, scale=scale)
        out_flat = pl.pallas_call(
            kernel,
            out_shape=out_shape,
            grid_spec=pltpu.PrefetchScalarGridSpec(
                num_scalar_prefetch=1,
                grid=(num_tiles,),
                in_specs=[pl.BlockSpec((V, D), lambda i, ids_sref: (0, 0))],
                out_specs=out_block,
            ),
            compiler_params=cparams,
        )(ids, embed_table)
    else:
        kernel = functools.partial(_hbm_gather_kernel,
                                   tile_n=eff_tile, scale=scale)
        out_flat = pl.pallas_call(
            kernel,
            out_shape=out_shape,
            grid_spec=pltpu.PrefetchScalarGridSpec(
                num_scalar_prefetch=1,
                grid=(num_tiles,),
                in_specs=[pl.BlockSpec(memory_space=pl.ANY)],  # table in HBM
                out_specs=out_block,
                scratch_shapes=[pltpu.SemaphoreType.DMA(())],
            ),
            compiler_params=cparams,
        )(ids, embed_table)

    if n_pad != N:
        out_flat = out_flat[:N]
    return out_flat.reshape(B, S, D)


if __name__ == "__main__":
    # Small shapes consistent with the module's forward.
    vocab_size = 64
    d_model = 32
    pad_idx = 0      # module stores it but nn.Embedding is built without padding_idx
    B, S = 2, 8

    key = jax.random.PRNGKey(0)
    k_w, k_x = jax.random.split(key)

    # Deterministic parameter init (nn.Embedding default ~ N(0, 1)).
    embed_table = jax.random.normal(k_w, (vocab_size, d_model), dtype=jnp.float32)
    x = jax.random.randint(k_x, (B, S), 0, vocab_size, dtype=jnp.int32)

    ref = embed_table[x] * math.sqrt(d_model)

    # Fast path: VMEM-resident table, dynamic-slice gather.
    out = jax.block_until_ready(token_embedding(x, embed_table))
    assert out.shape == (B, S, d_model)
    assert jnp.allclose(out, ref, atol=1e-5, rtol=1e-5)

    # Large-vocab path (forced): HBM table + per-row DMA gather, aggregate wait.
    out_hbm = jax.block_until_ready(
        token_embedding(x, embed_table, force_hbm_gather=True))
    assert jnp.allclose(out_hbm, ref, atol=1e-5, rtol=1e-5)

    print("KERNEL_OK")
</pallas_src>

<mosaic_0001>
module attributes {stable_mosaic.version = 11 : i64} {
  func.func @_vmem_gather_kernel(%arg0: i32, %arg1: memref<16xi32, #tpu.memory_space<smem>>, %arg2: memref<64x32xf32, #tpu.memory_space<vmem>>, %arg3: memref<8x32xf32, #tpu.memory_space<vmem>>) attributes {dimension_semantics = [#tpu.dimension_semantics<parallel>], iteration_bounds = array<i64: 2>, scalar_prefetch = 1 : i64, scratch_operands = 0 : i64, tpu.core_type = #tpu.core_type<tc>, window_params = [{pipeline_mode = #tpu.pipeline_mode<synchronous>, transform_indices = @transform_0, window_bounds = array<i64: 64, 32>}, {transform_indices = @transform_1, window_bounds = array<i64: 8, 32>}]} {
    %c8_i32 = arith.constant 8 : i32
    %0 = arith.muli %arg0, %c8_i32 : i32
    %c0_i32 = arith.constant 0 : i32
    %c8_i32_0 = arith.constant 8 : i32
    %1 = arith.muli %c0_i32, %c8_i32_0 : i32
    %2 = arith.addi %0, %1 : i32
    %c0_i32_1 = arith.constant 0 : i32
    %3 = arith.addi %2, %c0_i32_1 : i32
    %4 = arith.index_cast %3 : i32 to index
    %5 = memref.load %arg1[%4] : memref<16xi32, #tpu.memory_space<smem>>
    %6 = arith.index_cast %5 : i32 to index
    %c0 = arith.constant 0 : index
    %7 = vector.load %arg2[%6, %c0] : memref<64x32xf32, #tpu.memory_space<vmem>>, vector<1x32xf32>
    %c8_i32_2 = arith.constant 8 : i32
    %8 = arith.muli %c0_i32, %c8_i32_2 : i32
    %9 = arith.addi %0, %8 : i32
    %c1_i32 = arith.constant 1 : i32
    %10 = arith.addi %9, %c1_i32 : i32
    %11 = arith.index_cast %10 : i32 to index
    %12 = memref.load %arg1[%11] : memref<16xi32, #tpu.memory_space<smem>>
    %13 = arith.index_cast %12 : i32 to index
    %c0_3 = arith.constant 0 : index
    %14 = vector.load %arg2[%13, %c0_3] : memref<64x32xf32, #tpu.memory_space<vmem>>, vector<1x32xf32>
    %c8_i32_4 = arith.constant 8 : i32
    %15 = arith.muli %c0_i32, %c8_i32_4 : i32
    %16 = arith.addi %0, %15 : i32
    %c2_i32 = arith.constant 2 : i32
    %17 = arith.addi %16, %c2_i32 : i32
    %18 = arith.index_cast %17 : i32 to index
    %19 = memref.load %arg1[%18] : memref<16xi32, #tpu.memory_space<smem>>
    %20 = arith.index_cast %19 : i32 to index
    %c0_5 = arith.constant 0 : index
    %21 = vector.load %arg2[%20, %c0_5] : memref<64x32xf32, #tpu.memory_space<vmem>>, vector<1x32xf32>
    %c8_i32_6 = arith.constant 8 : i32
    %22 = arith.muli %c0_i32, %c8_i32_6 : i32
    %23 = arith.addi %0, %22 : i32
    %c3_i32 = arith.constant 3 : i32
    %24 = arith.addi %23, %c3_i32 : i32
    %25 = arith.index_cast %24 : i32 to index
    %26 = memref.load %arg1[%25] : memref<16xi32, #tpu.memory_space<smem>>
    %27 = arith.index_cast %26 : i32 to index
    %c0_7 = arith.constant 0 : index
    %28 = vector.load %arg2[%27, %c0_7] : memref<64x32xf32, #tpu.memory_space<vmem>>, vector<1x32xf32>
    %c8_i32_8 = arith.constant 8 : i32
    %29 = arith.muli %c0_i32, %c8_i32_8 : i32
    %30 = arith.addi %0, %29 : i32
    %c4_i32 = arith.constant 4 : i32
    %31 = arith.addi %30, %c4_i32 : i32
    %32 = arith.index_cast %31 : i32 to index
    %33 = memref.load %arg1[%32] : memref<16xi32, #tpu.memory_space<smem>>
    %34 = arith.index_cast %33 : i32 to index
    %c0_9 = arith.constant 0 : index
    %35 = vector.load %arg2[%34, %c0_9] : memref<64x32xf32, #tpu.memory_space<vmem>>, vector<1x32xf32>
    %c8_i32_10 = arith.constant 8 : i32
    %36 = arith.muli %c0_i32, %c8_i32_10 : i32
    %37 = arith.addi %0, %36 : i32
    %c5_i32 = arith.constant 5 : i32
    %38 = arith.addi %37, %c5_i32 : i32
    %39 = arith.index_cast %38 : i32 to index
    %40 = memref.load %arg1[%39] : memref<16xi32, #tpu.memory_space<smem>>
    %41 = arith.index_cast %40 : i32 to index
    %c0_11 = arith.constant 0 : index
    %42 = vector.load %arg2[%41, %c0_11] : memref<64x32xf32, #tpu.memory_space<vmem>>, vector<1x32xf32>
    %c8_i32_12 = arith.constant 8 : i32
    %43 = arith.muli %c0_i32, %c8_i32_12 : i32
    %44 = arith.addi %0, %43 : i32
    %c6_i32 = arith.constant 6 : i32
    %45 = arith.addi %44, %c6_i32 : i32
    %46 = arith.index_cast %45 : i32 to index
    %47 = memref.load %arg1[%46] : memref<16xi32, #tpu.memory_space<smem>>
    %48 = arith.index_cast %47 : i32 to index
    %c0_13 = arith.constant 0 : index
    %49 = vector.load %arg2[%48, %c0_13] : memref<64x32xf32, #tpu.memory_space<vmem>>, vector<1x32xf32>
    %c8_i32_14 = arith.constant 8 : i32
    %50 = arith.muli %c0_i32, %c8_i32_14 : i32
    %51 = arith.addi %0, %50 : i32
    %c7_i32 = arith.constant 7 : i32
    %52 = arith.addi %51, %c7_i32 : i32
    %53 = arith.index_cast %52 : i32 to index
    %54 = memref.load %arg1[%53] : memref<16xi32, #tpu.memory_space<smem>>
    %55 = arith.index_cast %54 : i32 to index
    %c0_15 = arith.constant 0 : index
    %56 = vector.load %arg2[%55, %c0_15] : memref<64x32xf32, #tpu.memory_space<vmem>>, vector<1x32xf32>
    %c8_i32_16 = arith.constant 8 : i32
    %57 = arith.muli %c0_i32, %c8_i32_16 : i32
    %58 = tpu.assume_multiple %57, 8 : i32
    %59 = tpu.concatenate %7, %14, %21, %28, %35, %42, %49, %56 in 0 : vector<1x32xf32>, vector<1x32xf32>, vector<1x32xf32>, vector<1x32xf32>, vector<1x32xf32>, vector<1x32xf32>, vector<1x32xf32>, vector<1x32xf32> -> vector<8x32xf32>
    %cst = arith.constant 5.65685415 : f32
    %60 = vector.broadcast %cst : f32 to vector<8x32xf32>
    %61 = arith.mulf %59, %60 : vector<8x32xf32>
    %62 = arith.index_cast %58 : i32 to index
    %c0_17 = arith.constant 0 : index
    %63 = vector.load %arg3[%62, %c0_17] : memref<8x32xf32, #tpu.memory_space<vmem>>, vector<8x32xf32>
    tpu.vector_store %arg3[%62, %c0_17], %61 {strides = array<i32>} : memref<8x32xf32, #tpu.memory_space<vmem>>, vector<8x32xf32>,
    %c1_i32_18 = arith.constant 1 : i32
    return
  }
  func.func @transform_0(%arg0: i32, %arg1: memref<16xi32, #tpu.memory_space<smem>>) -> (i32, i32) {
    %c0_i32 = arith.constant 0 : i32
    %c0_i32_0 = arith.constant 0 : i32
    %c0_i32_1 = arith.constant 0 : i32
    return %c0_i32, %c0_i32_0 : i32, i32
  }
  func.func @transform_1(%arg0: i32, %arg1: memref<16xi32, #tpu.memory_space<smem>>) -> (i32, i32) {
    %c0_i32 = arith.constant 0 : i32
    %c0_i32_0 = arith.constant 0 : i32
    return %arg0, %c0_i32 : i32, i32
  }
}

</mosaic_0001>

<llo_original>
// kernel: tpu_custom_call.1
$region0: #{tpu_custom_call.1}
  #allocation0 [shape = 'u32[]', space=smem, size = 0x4, offset = 0x4, fixed_abs, tag = 'smem constant byte address 0x4 - core index']
  #allocation1 [shape = 'u32[72,128]{1,0:T(1,128)}', space=vmem, size = 0x9000, scoped, tag = 'internal scratch']
  #allocation2 [shape = 's32[1]{0}', space=sflag, size = 0x4, scoped, tag = 'scoped memory for tpu_custom_call.1']
  #allocation3 [shape = 'u8[512]{0}', space=smem, size = 0x200, scoped, tag = 'prefetched SMEM operand 0']
  %s0 = inlined_call_operand.vmem [shape: s32[16], index: 0, kind: input, shape index: {}]
  %s1 = inlined_call_operand.vmem [shape: f32[64,32], index: 1, kind: input, shape index: {}]
  %s2 = inlined_call_operand.hbm [shape: f32[16,32], index: 2, kind: output, shape index: {}]
  %s3 = sld [smem:[#allocation0]]
  $region37: #{tpu_custom_call.1} parent=0
    _
  %s5 = ssub.s32 1, %s3
  %s6 = scalar_select 0, %s5, %s3
  %s8 = sshll.u32 %s0, 4
  %s9 = int_to_ptr.vmem [resolvable:$true] %s8
  %11 = dma.vmem_to_smem %s9, 16, [#allocation3], [#allocation2]
  %13 = dma.done [#allocation2], 16
  %14 = sfence
  $region1: #{tpu_custom_call.1} parent=0
    #allocation4 [shape = 'u8[8192]{0}', space=vmem, size = 0x2000, scoped, tag = 'output window, operand 0']
    #allocation5 [shape = 's32[2]{0}', space=sflag, size = 0x8, scoped, tag = 'scoped memory for tpu_custom_call.1']
    %15 = vsyncpa [#allocation5], 0
    %s16 = scalar_lea.sflag [#allocation5], 1
    %17 = vsyncpa %s16, 0
    loop: start=0, step=1, limit=4
    $region2: #{tpu_custom_call.1} parent=1 // loop_pre_header
      _
    $region3: #{tpu_custom_call.1} parent=1 // loop_header
      %s19 = sphi 0, %s23
      %p20 = scmp.ge.s32.totalorder %s19, 4
      %s27 = sphi 0, %s27
      %s29 = sphi 0, %s27
      %s30 = sphi 0, %s29
      %s44 = sphi 0, %s30
      %s50 = sphi 0, %s52
      %s53 = sphi 0, %s50
      %s54 = sphi 0, %s53
      %s70 = sphi 0, %s54
    $region4: #{tpu_custom_call.1} parent=1 // loop_header_branch
      %22 = sbr.rel (%p20) target = $region8
    $region5: #{tpu_custom_call.1} parent=1 // loop_body
      %s24 = ssub.s32 %s19, 1
      %s25 = ssub.s32 %s19, 2
      %s26 = sadd.s32 %s19, 1
      %s28 = sadd.s32 %s27, 1
      %p31 = scmp.eq.s32.totalorder %s19, 1
      %p32 = scmp.ne.s32.totalorder %s27, %s29
      %p33 = scmp.eq.s32.totalorder %s19, 0
      %p34 = por %p32, %p33
      %p35 = scmp.ne.s32.totalorder %s27, %s29
      %p36 = scmp.eq.s32.totalorder %s24, 1
      %p37 = por %p35, %p36
      %p38 = scmp.ne.s32.totalorder %s29, %s30
      %p39 = scmp.eq.s32.totalorder %s24, 0
      %p40 = por %p38, %p39
      %p41 = scmp.ne.s32.totalorder %s29, %s30
      %p42 = scmp.eq.s32.totalorder %s25, 1
      %p43 = por %p41, %p42
      %p45 = scmp.ne.s32.totalorder %s30, %s44
      %p46 = scmp.eq.s32.totalorder %s25, 0
      %p47 = por %p45, %p46
      %s48 = ssub.s32 %s19, %s26
      %p49 = scmp.eq.s32.totalorder %s48, 0
      %s51 = sadd.s32 %s50, 1
      %s52 = scalar_select %p49, %s50, %s51
      %p55 = pneg %p49
      %p56 = scmp.eq.s32.totalorder %s19, 1
      %p57 = por %p55, %p56
      %p58 = scmp.ne.s32.totalorder %s50, %s53
      %p59 = scmp.eq.s32.totalorder %s19, 0
      %p60 = por %p58, %p59
      %p61 = scmp.ne.s32.totalorder %s50, %s53
      %p62 = scmp.eq.s32.totalorder %s24, 1
      %p63 = por %p61, %p62
      %p64 = scmp.ne.s32.totalorder %s53, %s54
      %p65 = scmp.eq.s32.totalorder %s24, 0
      %p66 = por %p64, %p65
      %p67 = scmp.ne.s32.totalorder %s53, %s54
      %p68 = scmp.eq.s32.totalorder %s25, 1
      %p69 = por %p67, %p68
      %p71 = scmp.ne.s32.totalorder %s54, %s70
      %p72 = scmp.eq.s32.totalorder %s25, 0
      %p73 = por %p71, %p72
      %p74 = scmp.le.s32.totalorder 1, %s19
      %p75 = scmp.lt.s32.totalorder %s19, 3
      %p76 = pnand %p74, %p75
      %p77 = pneg %p76
      // Predicated region
      $region9: #{tpu_custom_call.1} parent=5 // pred_check
        _
      $region10: #{tpu_custom_call.1} parent=5 // pred_check_branch
        %79 = sbr.rel (%p76) target = $region12
      $region11: #{tpu_custom_call.1} parent=5 // pred_region
        %s80 = ssub.s32 %s19, 1
        // Predicated region
        $region13: #{tpu_custom_call.1} parent=11 // pred_check
          %p81 = pneg %p40
        $region14: #{tpu_custom_call.1} parent=11 // pred_check_branch
          %83 = sbr.rel (%p81) target = $region16
        $region15: #{tpu_custom_call.1} parent=11 // pred_region
          _
        $region16: #{tpu_custom_call.1} parent=11 // pred_fallthru
          _
      $region12: #{tpu_custom_call.1} parent=5 // pred_fallthru
        _
      %p84 = scmp.lt.s32.totalorder %s19, 2
      // Predicated region
      $region17: #{tpu_custom_call.1} parent=5 // pred_check
        %p85 = pneg %p84
      $region18: #{tpu_custom_call.1} parent=5 // pred_check_branch
        %87 = sbr.rel (%p85) target = $region20
      $region19: #{tpu_custom_call.1} parent=5 // pred_region
        _
      $region20: #{tpu_custom_call.1} parent=5 // pred_fallthru
        _
      %p88 = scmp.le.s32.totalorder 1, %s19
      %p89 = scmp.lt.s32.totalorder %s19, 3
      %p90 = pnand %p88, %p89
      %p91 = pneg %p90
      // Predicated region
      $region21: #{tpu_custom_call.1} parent=5 // pred_check
        _
      $region22: #{tpu_custom_call.1} parent=5 // pred_check_branch
        %93 = sbr.rel (%p90) target = $region24
      $region23: #{tpu_custom_call.1} parent=5 // pred_region
        %s94 = ssub.s32 %s19, 1
        %p95 = pneg %p40
        %p96 = pneg %p37
        %p97 = pneg %p66
        %p98 = pneg %p63
        %s99 = sand.u32 %s53, 1
        %s100 = scalar_lea.sflag [#allocation5], %s99
        %s101 = sand.u32 %s53, 1
        %s102 = smul.addr %s101, 8
        %s103 = scalar_lea.vmem [#allocation4], %s102
        %s104 = smul.u32 %s24, 8
        %s105 = sld [smem:[#allocation3 + %s104]]
        %s106 = scalar_lea.vmem %s1, %s105
        %v107 = vld [vmem:[%s106] sm:$0x1]
        %s108 = sadd.s32 %s104, 1
        %s109 = sld [smem:[#allocation3 + %s108]]
        %s110 = scalar_lea.vmem %s1, %s109
        %v111 = vld [vmem:[%s110] sm:$0x1]
        %s112 = sadd.s32 %s104, 2
        %s113 = sld [smem:[#allocation3 + %s112]]
        %s114 = scalar_lea.vmem %s1, %s113
        %v115 = vld [vmem:[%s114] sm:$0x1]
        %s116 = sadd.s32 %s104, 3
        %s117 = sld [smem:[#allocation3 + %s116]]
        %s118 = scalar_lea.vmem %s1, %s117
        %v119 = vld [vmem:[%s118] sm:$0x1]
        %s120 = sadd.s32 %s104, 4
        %s121 = sld [smem:[#allocation3 + %s120]]
        %s122 = scalar_lea.vmem %s1, %s121
        %v123 = vld [vmem:[%s122] sm:$0x1]
        %s124 = sadd.s32 %s104, 5
        %s125 = sld [smem:[#allocation3 + %s124]]
        %s126 = scalar_lea.vmem %s1, %s125
        %v127 = vld [vmem:[%s126] sm:$0x1]
        %s128 = sadd.s32 %s104, 6
        %s129 = sld [smem:[#allocation3 + %s128]]
        %s130 = scalar_lea.vmem %s1, %s129
        %v131 = vld [vmem:[%s130] sm:$0x1]
        %s132 = sadd.s32 %s104, 7
        %s133 = sld [smem:[#allocation3 + %s132]]
        %s134 = scalar_lea.vmem %s1, %s133
        %v135 = vld [vmem:[%s134] sm:$0x1]
        %v137 = vrot.slane %v111, 7
        %v140 = vrot.slane %v115, 6
        %v143 = vrot.slane %v119, 5
        %v146 = vrot.slane %v123, 4
        %v149 = vrot.slane %v127, 3
        %v152 = vrot.slane %v131, 2
        %v155 = vrot.slane %v135, 1
        %vm157 = vcmask 1040384
        %v158 = vsel %vm157, %v107, %v137
        %vm159 = vcmask 1041408
        %v160 = vsel %vm159, %v158, %v140
        %vm161 = vcmask 1042432
        %v162 = vsel %vm161, %v160, %v143
        %vm163 = vcmask 1043456
        %v164 = vsel %vm163, %v162, %v146
        %vm165 = vcmask 1044480
        %v166 = vsel %vm165, %v164, %v149
        %vm167 = vcmask 1045504
        %v168 = vsel %vm167, %v166, %v152
        %vm169 = vcmask 1046528
        %v170 = vsel %vm169, %v168, %v155
        %v171 = vmul.f32 %v170, 5.656854
        %vm172 = vcmask 261120
        %173 = vst.msk [vmem:[%s103] sm:$0xff] %vm172, %v171
        %s174 = sand.u32 %s53, 1
        %s175 = scalar_lea.sflag [#allocation5], %s174
        %s176 = sand.u32 %s53, 1
        %s177 = smul.addr %s176, 8
        %s178 = scalar_lea.vmem [#allocation4], %s177
        // Predicated region
        $region25: #{tpu_custom_call.1} parent=23 // pred_check
          %p179 = pneg %p63
        $region26: #{tpu_custom_call.1} parent=23 // pred_check_branch
          %181 = sbr.rel (%p179) target = $region28
        $region27: #{tpu_custom_call.1} parent=23 // pred_region
          %183 = vsyncadd %s175, 0
          %s184 = smul.addr %s24, 8
          %s185 = scalar_lea.hbm %s2, %s184
          %s187 = sshll.u32 %s178, 4
          %s188 = int_to_ptr.vmem [resolvable:$true] %s187
          %s189 = sshll.u32 %s185, 4
          %s190 = int_to_ptr.hbm [resolvable:$true] %s189
          %192 = dma.vmem_to_hbm [thread:$0]  %s188, 128, %s190, %s175
        $region28: #{tpu_custom_call.1} parent=23 // pred_fallthru
          _
      $region24: #{tpu_custom_call.1} parent=5 // pred_fallthru
        _
      %p193 = scmp.le.s32.totalorder 2, %s19
      // Predicated region
      $region29: #{tpu_custom_call.1} parent=5 // pred_check
        %p194 = pneg %p193
      $region30: #{tpu_custom_call.1} parent=5 // pred_check_branch
        %196 = sbr.rel (%p194) target = $region32
      $region31: #{tpu_custom_call.1} parent=5 // pred_region
        %s197 = ssub.s32 %s19, 2
        // Predicated region
        $region33: #{tpu_custom_call.1} parent=31 // pred_check
          %p198 = pneg %p69
        $region34: #{tpu_custom_call.1} parent=31 // pred_check_branch
          %200 = sbr.rel (%p198) target = $region36
        $region35: #{tpu_custom_call.1} parent=31 // pred_region
          %s201 = sand.u32 %s54, 1
          %s202 = scalar_lea.sflag [#allocation5], %s201
          %s203 = sand.u32 %s54, 1
          %s204 = smul.addr %s203, 8
          %s205 = scalar_lea.vmem [#allocation4], %s204
          %207 = dma.done %s202, 128
        $region36: #{tpu_custom_call.1} parent=31 // pred_fallthru
          _
      $region32: #{tpu_custom_call.1} parent=5 // pred_fallthru
        _
    $region6: #{tpu_custom_call.1} parent=1 // loop_footer
      %s23 = sadd.s32 1, %s19
    $region7: #{tpu_custom_call.1} parent=1 // loop_footer_branch
      %18 = sbr.rel target = $region3
    $region8: #{tpu_custom_call.1} parent=1 // loop_exit
      _
    %208 = vsyncpa [#allocation5], 1
    %s209 = scalar_lea.sflag [#allocation5], 1
    %210 = vsyncpa %s209, 1

</llo_original>
